<compile_context>
chip_gen: v6e
topology: v6e:2x2x1
jax: 0.10.0
libtpu: 0.0.40
codegen_flags: <defaults>
</compile_context>

<pallas_src>
import jax
import jax.numpy as jnp
from jax.experimental import pallas as pl
from jax.experimental.pallas import tpu as pltpu


# ----------------------------------------------------------------------------
# Pallas kernels
# ----------------------------------------------------------------------------
def _interpolate_kernel(x_ref, cb_ref, o_ref):
    # (TN, K) @ (K, C) on the MXU, f32 accumulation; hidden under the DMA.
    o_ref[...] = jnp.dot(
        x_ref[...], cb_ref[...], preferred_element_type=jnp.float32
    ).astype(o_ref.dtype)


def _argmax_kernel(x_ref, cb_ref, o_ref):
    # codebook[argmax(x, -1)] without routing a gather through the MXU:
    # first-max-wins argmax + statically unrolled K-step select-accumulate.
    x = x_ref[...]                                   # (TN, K)
    cb = cb_ref[...]                                 # (K, C)
    idx = jnp.argmax(x, axis=-1)                     # (TN,), first max wins
    out = jnp.zeros((x.shape[0], cb.shape[1]), jnp.float32)
    for k in range(cb.shape[0]):                     # K small & static (8)
        out = jnp.where((idx == k)[:, None], cb[k][None, :], out)
    o_ref[...] = out.astype(o_ref.dtype)


# ----------------------------------------------------------------------------
# Wrapper
# ----------------------------------------------------------------------------
def codebook_mask_head(x, codebook, mode="interpolate", block_rows=2048):
    """x: (..., K), codebook: (K, C) -> (..., C)."""
    if mode == "interpolate":
        kernel = _interpolate_kernel
        out_dtype = x.dtype
    elif mode == "argmax":
        kernel = _argmax_kernel
        out_dtype = codebook.dtype
    else:
        raise ValueError(f'invalid mode "{mode}"')

    orig_shape = x.shape
    k = orig_shape[-1]
    c = codebook.shape[-1]
    n = 1
    for d in orig_shape[:-1]:
        n *= d
    x2d = x.reshape(n, k)

    # Row tile:
    #  * n <= block_rows: one block whose row-dim equals the full array dim
    #    (legal for any n, even non-multiples of 8) -> no padding needed.
    #  * n  > block_rows: fixed tile (multiple of 8); partial edge block is
    #    handled by Pallas (OOB reads are garbage rows that only feed
    #    discarded OOB writes; both modes are row-wise independent).
    block_rows = max(8, (block_rows // 8) * 8)
    tn = n if n <= block_rows else block_rows
    grid = (pl.cdiv(n, tn),)

    out2d = pl.pallas_call(
        kernel,
        out_shape=jax.ShapeDtypeStruct((n, c), out_dtype),
        grid=grid,
        in_specs=[
            pl.BlockSpec((tn, k), lambda i: (i, 0)),   # streamed row tiles
            pl.BlockSpec((k, c), lambda i: (0, 0)),    # codebook stays resident
        ],
        out_specs=pl.BlockSpec((tn, c), lambda i: (i, 0)),
        compiler_params=pltpu.CompilerParams(
            dimension_semantics=("parallel",),         # megacore sharding (v7x)
        ),
        cost_estimate=pl.CostEstimate(
            flops=2 * n * k * c,
            transcendentals=0,
            bytes_accessed=(x.dtype.itemsize * (n * k + k * c)
                            + jnp.dtype(out_dtype).itemsize * n * c),
        ),
    )(x2d, codebook)

    return out2d.reshape(orig_shape[:-1] + (c,))


# ----------------------------------------------------------------------------
# Reference (plain JAX) for sanity checking
# ----------------------------------------------------------------------------
def codebook_mask_head_ref(x, codebook, mode="interpolate"):
    if mode == "interpolate":
        return jnp.matmul(x, codebook)
    elif mode == "argmax":
        return codebook[jnp.argmax(x, axis=-1)]
    raise ValueError(mode)


if __name__ == "__main__":
    key = jax.random.PRNGKey(0)

    # Small shapes consistent with the module: batch=2, time=8, freq=16,
    # K=8 codebook entries, each a vector of C=4 values.
    B, T, F, K, C = 2, 8, 16, 8, 4

    kx, kx2 = jax.random.split(key)
    x = jax.random.normal(kx, (B, T, F, K), dtype=jnp.float32)
    # Deterministic codebook parameter (synthetic init, no checkpoint load).
    codebook = (
        jnp.linspace(0.0, 1.0, K * C, dtype=jnp.float32).reshape(K, C) - 0.5
    )

    # interpolate mode (default; N=256 fits a single row tile)
    out = jax.block_until_ready(codebook_mask_head(x, codebook, "interpolate"))
    ref = codebook_mask_head_ref(x, codebook, "interpolate")
    assert out.shape == (B, T, F, C)
    assert jnp.allclose(out, ref, atol=1e-5, rtol=1e-5)

    # argmax mode (VPU select-accumulate path)
    out_am = jax.block_until_ready(codebook_mask_head(x, codebook, "argmax"))
    ref_am = codebook_mask_head_ref(x, codebook, "argmax")
    assert jnp.allclose(out_am, ref_am, atol=1e-6, rtol=1e-6)

    # Multi-step grid with a partial edge block (grid=(3,): 96+96+64 rows).
    out_t = jax.block_until_ready(
        codebook_mask_head(x, codebook, "interpolate", block_rows=96))
    assert jnp.allclose(out_t, ref, atol=1e-5, rtol=1e-5)

    out_t_am = jax.block_until_ready(
        codebook_mask_head(x, codebook, "argmax", block_rows=96))
    assert jnp.allclose(out_t_am, ref_am, atol=1e-6, rtol=1e-6)

    # Non-multiple-of-8 row count (N=35): single block equal to full dims.
    x_odd = jax.random.normal(kx2, (5, 7, K), dtype=jnp.float32)
    out_o = jax.block_until_ready(codebook_mask_head(x_odd, codebook, "interpolate"))
    assert jnp.allclose(out_o, codebook_mask_head_ref(x_odd, codebook, "interpolate"),
                        atol=1e-5, rtol=1e-5)
    out_o_am = jax.block_until_ready(codebook_mask_head(x_odd, codebook, "argmax"))
    assert jnp.allclose(out_o_am, codebook_mask_head_ref(x_odd, codebook, "argmax"),
                        atol=1e-6, rtol=1e-6)

    print("KERNEL_OK")
</pallas_src>

<mosaic_0001>
module attributes {stable_mosaic.version = 11 : i64} {
  func.func @_interpolate_kernel(%arg0: i32, %arg1: memref<256x8xf32, #tpu.memory_space<vmem>>, %arg2: memref<8x4xf32, #tpu.memory_space<vmem>>, %arg3: memref<256x4xf32, #tpu.memory_space<vmem>>) attributes {dimension_semantics = [#tpu.dimension_semantics<parallel>], iteration_bounds = array<i64: 1>, scalar_prefetch = 0 : i64, scratch_operands = 0 : i64, tpu.core_type = #tpu.core_type<tc>, window_params = [{transform_indices = @transform_0, window_bounds = array<i64: 256, 8>}, {pipeline_mode = #tpu.pipeline_mode<synchronous>, transform_indices = @transform_1, window_bounds = array<i64: 8, 4>}, {transform_indices = @transform_2, window_bounds = array<i64: 256, 4>}]} {
    %c0 = arith.constant 0 : index
    %c0_0 = arith.constant 0 : index
    %0 = vector.load %arg1[%c0, %c0_0] : memref<256x8xf32, #tpu.memory_space<vmem>>, vector<256x8xf32>
    %c0_1 = arith.constant 0 : index
    %c0_2 = arith.constant 0 : index
    %1 = vector.load %arg2[%c0_1, %c0_2] : memref<8x4xf32, #tpu.memory_space<vmem>>, vector<8x4xf32>
    %cst = arith.constant dense<0.000000e+00> : vector<256x4xf32>
    %2 = tpu.matmul %0, %1, %cst {dimension_numbers = #tpu.dot_dimension_numbers<[1], [0], [0], [1], [0, 0, 1, 1], [], []>} : vector<256x8xf32>, vector<8x4xf32>, vector<256x4xf32> -> vector<256x4xf32>
    %c0_3 = arith.constant 0 : index
    %c0_4 = arith.constant 0 : index
    %3 = vector.load %arg3[%c0_3, %c0_4] : memref<256x4xf32, #tpu.memory_space<vmem>>, vector<256x4xf32>
    tpu.vector_store %arg3[%c0_3, %c0_4], %2 {strides = array<i32>} : memref<256x4xf32, #tpu.memory_space<vmem>>, vector<256x4xf32>,
    return
  }
  func.func @transform_0(%arg0: i32) -> (i32, i32) {
    %c0_i32 = arith.constant 0 : i32
    %c0_i32_0 = arith.constant 0 : i32
    return %arg0, %c0_i32 : i32, i32
  }
  func.func @transform_1(%arg0: i32) -> (i32, i32) {
    %c0_i32 = arith.constant 0 : i32
    %c0_i32_0 = arith.constant 0 : i32
    %c0_i32_1 = arith.constant 0 : i32
    return %c0_i32, %c0_i32_0 : i32, i32
  }
  func.func @transform_2(%arg0: i32) -> (i32, i32) {
    %c0_i32 = arith.constant 0 : i32
    %c0_i32_0 = arith.constant 0 : i32
    return %arg0, %c0_i32 : i32, i32
  }
}

</mosaic_0001>

<llo_original>
// kernel: tpu_custom_call.1
$region0: #{tpu_custom_call.1}
  #allocation0 [shape = 'u32[]', space=smem, size = 0x4, offset = 0x4, fixed_abs, tag = 'smem constant byte address 0x4 - core index']
  #allocation1 [shape = 'u32[144,128]{1,0:T(1,128)}', space=vmem, size = 0x12000, scoped, tag = 'internal scratch']
  %s0 = inlined_call_operand.vmem [shape: f32[256,8], index: 0, kind: input, shape index: {}]
  %s1 = inlined_call_operand.vmem [shape: f32[8,4], index: 1, kind: input, shape index: {}]
  %s2 = inlined_call_operand.vmem [shape: f32[256,4], index: 2, kind: output, shape index: {}]
  %s3 = sld [smem:[#allocation0]]
  $region18: #{tpu_custom_call.1} parent=0
    _
  %s5 = ssub.s32 1, %s3
  %s6 = scalar_select 0, %s5, %s3
  // Predicated region
  $region2: #{tpu_custom_call.1} parent=0 // pred_check
    _
  $region3: #{tpu_custom_call.1} parent=0 // pred_check_branch
    %8 = sbr.rel (0) target = $region5
  $region4: #{tpu_custom_call.1} parent=0 // pred_region
    _
  $region5: #{tpu_custom_call.1} parent=0 // pred_fallthru
    _
  // Predicated region
  $region6: #{tpu_custom_call.1} parent=0 // pred_check
    _
  $region7: #{tpu_custom_call.1} parent=0 // pred_check_branch
    %10 = sbr.rel (0) target = $region9
  $region8: #{tpu_custom_call.1} parent=0 // pred_region
    _
  $region9: #{tpu_custom_call.1} parent=0 // pred_fallthru
    _
  %v11 = vld [vmem:[%s0] sm:$0xff]
  %v12 = vld [vmem:[%s0 + $0x8] sm:$0xff]
  %v13 = vld [vmem:[%s0 + $0x10] sm:$0xff]
  %v14 = vld [vmem:[%s0 + $0x18] sm:$0xff]
  %v15 = vld [vmem:[%s0 + $0x20] sm:$0xff]
  %v16 = vld [vmem:[%s0 + $0x28] sm:$0xff]
  %v17 = vld [vmem:[%s0 + $0x30] sm:$0xff]
  %v18 = vld [vmem:[%s0 + $0x38] sm:$0xff]
  %v19 = vld [vmem:[%s0 + $0x40] sm:$0xff]
  %v20 = vld [vmem:[%s0 + $0x48] sm:$0xff]
  %v21 = vld [vmem:[%s0 + $0x50] sm:$0xff]
  %v22 = vld [vmem:[%s0 + $0x58] sm:$0xff]
  %v23 = vld [vmem:[%s0 + $0x60] sm:$0xff]
  %v24 = vld [vmem:[%s0 + $0x68] sm:$0xff]
  %v25 = vld [vmem:[%s0 + $0x70] sm:$0xff]
  %v26 = vld [vmem:[%s0 + $0x78] sm:$0xff]
  %v27 = vld [vmem:[%s0 + $0x80] sm:$0xff]
  %v28 = vld [vmem:[%s0 + $0x88] sm:$0xff]
  %v29 = vld [vmem:[%s0 + $0x90] sm:$0xff]
  %v30 = vld [vmem:[%s0 + $0x98] sm:$0xff]
  %v31 = vld [vmem:[%s0 + $0xa0] sm:$0xff]
  %v32 = vld [vmem:[%s0 + $0xa8] sm:$0xff]
  %v33 = vld [vmem:[%s0 + $0xb0] sm:$0xff]
  %v34 = vld [vmem:[%s0 + $0xb8] sm:$0xff]
  %v35 = vld [vmem:[%s0 + $0xc0] sm:$0xff]
  %v36 = vld [vmem:[%s0 + $0xc8] sm:$0xff]
  %v37 = vld [vmem:[%s0 + $0xd0] sm:$0xff]
  %v38 = vld [vmem:[%s0 + $0xd8] sm:$0xff]
  %v39 = vld [vmem:[%s0 + $0xe0] sm:$0xff]
  %v40 = vld [vmem:[%s0 + $0xe8] sm:$0xff]
  %v41 = vld [vmem:[%s0 + $0xf0] sm:$0xff]
  %v42 = vld [vmem:[%s0 + $0xf8] sm:$0xff]
  %v43 = vld [vmem:[%s1] sm:$0xff]
  %vm44 = vcmask 64512
  %v46 = vsel %vm44, %v11, 0
  %v49 = vsel %vm44, %v12, 0
  %v52 = vsel %vm44, %v13, 0
  %v55 = vsel %vm44, %v14, 0
  %v58 = vsel %vm44, %v15, 0
  %v61 = vsel %vm44, %v16, 0
  %v64 = vsel %vm44, %v17, 0
  %v67 = vsel %vm44, %v18, 0
  %v70 = vsel %vm44, %v19, 0
  %v73 = vsel %vm44, %v20, 0
  %v76 = vsel %vm44, %v21, 0
  %v79 = vsel %vm44, %v22, 0
  %v82 = vsel %vm44, %v23, 0
  %v85 = vsel %vm44, %v24, 0
  %v88 = vsel %vm44, %v25, 0
  %v91 = vsel %vm44, %v26, 0
  %v94 = vsel %vm44, %v27, 0
  %v97 = vsel %vm44, %v28, 0
  %v100 = vsel %vm44, %v29, 0
  %v103 = vsel %vm44, %v30, 0
  %v106 = vsel %vm44, %v31, 0
  %v109 = vsel %vm44, %v32, 0
  %v112 = vsel %vm44, %v33, 0
  %v115 = vsel %vm44, %v34, 0
  %v118 = vsel %vm44, %v35, 0
  %v121 = vsel %vm44, %v36, 0
  %v124 = vsel %vm44, %v37, 0
  %v127 = vsel %vm44, %v38, 0
  %v130 = vsel %vm44, %v39, 0
  %v133 = vsel %vm44, %v40, 0
  %v136 = vsel %vm44, %v41, 0
  %v139 = vsel %vm44, %v42, 0
  %141 = vmatprep.subr.mxu0 0.0
  %142 = vmatpush1.msra.mxu0 0.0
  %143 = vmatprep.subr.mxu0 0.0
  %144 = vmatpush1.msra.mxu0 0.0
  %145 = vmatprep.subr.mxu0 0.0
  %146 = vmatpush1.msra.mxu0 0.0
  %147 = vmatprep.subr.mxu0 0.0
  %148 = vmatpush1.msra.mxu0 0.0
  %149 = vmatprep.subr.mxu0 0.0
  %150 = vmatpush1.msra.mxu0 0.0
  %151 = vmatprep.subr.mxu0 0.0
  %152 = vmatpush1.msra.mxu0 0.0
  %153 = vmatprep.subr.mxu0 0.0
  %154 = vmatpush1.msra.mxu0 0.0
  %155 = vmatprep.subr.mxu0 0.0
  %156 = vmatpush1.msra.mxu0 0.0
  %157 = vmatprep.subr.mxu0 0.0
  %158 = vmatpush1.msra.mxu0 0.0
  %159 = vmatprep.subr.mxu0 0.0
  %160 = vmatpush1.msra.mxu0 0.0
  %161 = vmatprep.subr.mxu0 0.0
  %162 = vmatpush1.msra.mxu0 0.0
  %163 = vmatprep.subr.mxu0 0.0
  %164 = vmatpush1.msra.mxu0 0.0
  %165 = vmatprep.subr.mxu0 0.0
  %166 = vmatpush1.msra.mxu0 0.0
  %167 = vmatprep.subr.mxu0 0.0
  %168 = vmatpush1.msra.mxu0 0.0
  %169 = vmatprep.subr.mxu0 0.0
  %170 = vmatpush1.msra.mxu0 0.0
  %171 = vmatprep.subr.mxu0 0.0
  %172 = vmatpush1.msra.mxu0 %v43
  %173 = vmatprep.subr.mxu0 0.0
  %174 = vmatpush2.msra.mxu0 0.0
  %175 = vmatprep.subr.mxu0 0.0
  %176 = vmatpush2.msra.mxu0 0.0
  %177 = vmatprep.subr.mxu0 0.0
  %178 = vmatpush2.msra.mxu0 0.0
  %179 = vmatprep.subr.mxu0 0.0
  %180 = vmatpush2.msra.mxu0 0.0
  %181 = vmatprep.subr.mxu0 0.0
  %182 = vmatpush2.msra.mxu0 0.0
  %183 = vmatprep.subr.mxu0 0.0
  %184 = vmatpush2.msra.mxu0 0.0
  %185 = vmatprep.subr.mxu0 0.0
  %186 = vmatpush2.msra.mxu0 0.0
  %187 = vmatprep.subr.mxu0 0.0
  %188 = vmatpush2.msra.mxu0 0.0
  %189 = vmatprep.subr.mxu0 0.0
  %190 = vmatpush2.msra.mxu0 0.0
  %191 = vmatprep.subr.mxu0 0.0
  %192 = vmatpush2.msra.mxu0 0.0
  %193 = vmatprep.subr.mxu0 0.0
  %194 = vmatpush2.msra.mxu0 0.0
  %195 = vmatprep.subr.mxu0 0.0
  %196 = vmatpush2.msra.mxu0 0.0
  %197 = vmatprep.subr.mxu0 0.0
  %198 = vmatpush2.msra.mxu0 0.0
  %199 = vmatprep.subr.mxu0 0.0
  %200 = vmatpush2.msra.mxu0 0.0
  %201 = vmatprep.subr.mxu0 0.0
  %202 = vmatpush2.msra.mxu0 0.0
  %203 = vmatprep.subr.mxu0 0.0
  %204 = vmatpush2.msra.mxu0 0.0
  %205 = vmatprep.mubr.f32.mxu0 0.0
  %206 = vmatmul.mubr.f32.gmra.mxu0 %v46
  %v207 = vpop.f32.mrf.mxu0
  %v208 = vadd.f32 0.0, %v207
  %v209 = vpop.f32.mrf.mxu0
  %210 = vmatprep.mubr.f32.mxu0 0.0
  %211 = vmatmul.mubr.f32.gmra.mxu0 %v49
  %v212 = vpop.f32.mrf.mxu0
  %v213 = vadd.f32 0.0, %v212
  %v214 = vpop.f32.mrf.mxu0
  %215 = vmatprep.mubr.f32.mxu0 0.0
  %216 = vmatmul.mubr.f32.gmra.mxu0 %v52
  %v217 = vpop.f32.mrf.mxu0
  %v218 = vadd.f32 0.0, %v217
  %v219 = vpop.f32.mrf.mxu0
  %220 = vmatprep.mubr.f32.mxu0 0.0
  %221 = vmatmul.mubr.f32.gmra.mxu0 %v55
  %v222 = vpop.f32.mrf.mxu0
  %v223 = vadd.f32 0.0, %v222
  %v224 = vpop.f32.mrf.mxu0
  %225 = vmatprep.mubr.f32.mxu0 0.0
  %226 = vmatmul.mubr.f32.gmra.mxu0 %v58
  %v227 = vpop.f32.mrf.mxu0
  %v228 = vadd.f32 0.0, %v227
  %v229 = vpop.f32.mrf.mxu0
  %230 = vmatprep.mubr.f32.mxu0 0.0
  %231 = vmatmul.mubr.f32.gmra.mxu0 %v61
  %v232 = vpop.f32.mrf.mxu0
  %v233 = vadd.f32 0.0, %v232
  %v234 = vpop.f32.mrf.mxu0
  %235 = vmatprep.mubr.f32.mxu0 0.0
  %236 = vmatmul.mubr.f32.gmra.mxu0 %v64
  %v237 = vpop.f32.mrf.mxu0
  %v238 = vadd.f32 0.0, %v237
  %v239 = vpop.f32.mrf.mxu0
  %240 = vmatprep.mubr.f32.mxu0 0.0
  %241 = vmatmul.mubr.f32.gmra.mxu0 %v67
  %v242 = vpop.f32.mrf.mxu0
  %v243 = vadd.f32 0.0, %v242
  %v244 = vpop.f32.mrf.mxu0
  %245 = vmatprep.mubr.f32.mxu0 0.0
  %246 = vmatmul.mubr.f32.gmra.mxu0 %v70
  %v247 = vpop.f32.mrf.mxu0
  %v248 = vadd.f32 0.0, %v247
  %v249 = vpop.f32.mrf.mxu0
  %250 = vmatprep.mubr.f32.mxu0 0.0
  %251 = vmatmul.mubr.f32.gmra.mxu0 %v73
  %v252 = vpop.f32.mrf.mxu0
  %v253 = vadd.f32 0.0, %v252
  %v254 = vpop.f32.mrf.mxu0
  %255 = vmatprep.mubr.f32.mxu0 0.0
  %256 = vmatmul.mubr.f32.gmra.mxu0 %v76
  %v257 = vpop.f32.mrf.mxu0
  %v258 = vadd.f32 0.0, %v257
  %v259 = vpop.f32.mrf.mxu0
  %260 = vmatprep.mubr.f32.mxu0 0.0
  %261 = vmatmul.mubr.f32.gmra.mxu0 %v79
  %v262 = vpop.f32.mrf.mxu0
  %v263 = vadd.f32 0.0, %v262
  %v264 = vpop.f32.mrf.mxu0
  %265 = vmatprep.mubr.f32.mxu0 0.0
  %266 = vmatmul.mubr.f32.gmra.mxu0 %v82
  %v267 = vpop.f32.mrf.mxu0
  %v268 = vadd.f32 0.0, %v267
  %v269 = vpop.f32.mrf.mxu0
  %270 = vmatprep.mubr.f32.mxu0 0.0
  %271 = vmatmul.mubr.f32.gmra.mxu0 %v85
  %v272 = vpop.f32.mrf.mxu0
  %v273 = vadd.f32 0.0, %v272
  %v274 = vpop.f32.mrf.mxu0
  %275 = vmatprep.mubr.f32.mxu0 0.0
  %276 = vmatmul.mubr.f32.gmra.mxu0 %v88
  %v277 = vpop.f32.mrf.mxu0
  %v278 = vadd.f32 0.0, %v277
  %v279 = vpop.f32.mrf.mxu0
  %280 = vmatprep.mubr.f32.mxu0 0.0
  %281 = vmatmul.mubr.f32.gmra.mxu0 %v91
  %v282 = vpop.f32.mrf.mxu0
  %v283 = vadd.f32 0.0, %v282
  %v284 = vpop.f32.mrf.mxu0
  %285 = vmatprep.mubr.f32.mxu0 0.0
  %286 = vmatmul.mubr.f32.gmra.mxu0 %v94
  %v287 = vpop.f32.mrf.mxu0
  %v288 = vadd.f32 0.0, %v287
  %v289 = vpop.f32.mrf.mxu0
  %290 = vmatprep.mubr.f32.mxu0 0.0
  %291 = vmatmul.mubr.f32.gmra.mxu0 %v97
  %v292 = vpop.f32.mrf.mxu0
  %v293 = vadd.f32 0.0, %v292
  %v294 = vpop.f32.mrf.mxu0
  %295 = vmatprep.mubr.f32.mxu0 0.0
  %296 = vmatmul.mubr.f32.gmra.mxu0 %v100
  %v297 = vpop.f32.mrf.mxu0
  %v298 = vadd.f32 0.0, %v297
  %v299 = vpop.f32.mrf.mxu0
  %300 = vmatprep.mubr.f32.mxu0 0.0
  %301 = vmatmul.mubr.f32.gmra.mxu0 %v103
  %v302 = vpop.f32.mrf.mxu0
  %v303 = vadd.f32 0.0, %v302
  %v304 = vpop.f32.mrf.mxu0
  %305 = vmatprep.mubr.f32.mxu0 0.0
  %306 = vmatmul.mubr.f32.gmra.mxu0 %v106
  %v307 = vpop.f32.mrf.mxu0
  %v308 = vadd.f32 0.0, %v307
  %v309 = vpop.f32.mrf.mxu0
  %310 = vmatprep.mubr.f32.mxu0 0.0
  %311 = vmatmul.mubr.f32.gmra.mxu0 %v109
  %v312 = vpop.f32.mrf.mxu0
  %v313 = vadd.f32 0.0, %v312
  %v314 = vpop.f32.mrf.mxu0
  %315 = vmatprep.mubr.f32.mxu0 0.0
  %316 = vmatmul.mubr.f32.gmra.mxu0 %v112
  %v317 = vpop.f32.mrf.mxu0
  %v318 = vadd.f32 0.0, %v317
  %v319 = vpop.f32.mrf.mxu0
  %320 = vmatprep.mubr.f32.mxu0 0.0
  %321 = vmatmul.mubr.f32.gmra.mxu0 %v115
  %v322 = vpop.f32.mrf.mxu0
  %v323 = vadd.f32 0.0, %v322
  %v324 = vpop.f32.mrf.mxu0
  %325 = vmatprep.mubr.f32.mxu0 0.0
  %326 = vmatmul.mubr.f32.gmra.mxu0 %v118
  %v327 = vpop.f32.mrf.mxu0
  %v328 = vadd.f32 0.0, %v327
  %v329 = vpop.f32.mrf.mxu0
  %330 = vmatprep.mubr.f32.mxu0 0.0
  %331 = vmatmul.mubr.f32.gmra.mxu0 %v121
  %v332 = vpop.f32.mrf.mxu0
  %v333 = vadd.f32 0.0, %v332
  %v334 = vpop.f32.mrf.mxu0
  %335 = vmatprep.mubr.f32.mxu0 0.0
  %336 = vmatmul.mubr.f32.gmra.mxu0 %v124
  %v337 = vpop.f32.mrf.mxu0
  %v338 = vadd.f32 0.0, %v337
  %v339 = vpop.f32.mrf.mxu0
  %340 = vmatprep.mubr.f32.mxu0 0.0
  %341 = vmatmul.mubr.f32.gmra.mxu0 %v127
  %v342 = vpop.f32.mrf.mxu0
  %v343 = vadd.f32 0.0, %v342
  %v344 = vpop.f32.mrf.mxu0
  %345 = vmatprep.mubr.f32.mxu0 0.0
  %346 = vmatmul.mubr.f32.gmra.mxu0 %v130
  %v347 = vpop.f32.mrf.mxu0
  %v348 = vadd.f32 0.0, %v347
  %v349 = vpop.f32.mrf.mxu0
  %350 = vmatprep.mubr.f32.mxu0 0.0
  %351 = vmatmul.mubr.f32.gmra.mxu0 %v133
  %v352 = vpop.f32.mrf.mxu0
  %v353 = vadd.f32 0.0, %v352
  %v354 = vpop.f32.mrf.mxu0
  %355 = vmatprep.mubr.f32.mxu0 0.0
  %356 = vmatmul.mubr.f32.gmra.mxu0 %v136
  %v357 = vpop.f32.mrf.mxu0
  %v358 = vadd.f32 0.0, %v357
  %v359 = vpop.f32.mrf.mxu0
  %360 = vmatprep.mubr.f32.mxu0 0.0
  %361 = vmatmul.mubr.f32.gmra.mxu0 %v139
  %v362 = vpop.f32.mrf.mxu0
  %v363 = vadd.f32 0.0, %v362
  %v364 = vpop.f32.mrf.mxu0
  %365 = vdwg.mxu0
  %vm366 = vcmask 31744
  %367 = vst.msk [vmem:[%s2] sm:$0xff] %vm366, %v208
  %368 = vst.msk [vmem:[%s2 + $0x8] sm:$0xff] %vm366, %v213
  %369 = vst.msk [vmem:[%s2 + $0x10] sm:$0xff] %vm366, %v218
  %370 = vst.msk [vmem:[%s2 + $0x18] sm:$0xff] %vm366, %v223
  %371 = vst.msk [vmem:[%s2 + $0x20] sm:$0xff] %vm366, %v228
  %372 = vst.msk [vmem:[%s2 + $0x28] sm:$0xff] %vm366, %v233
  %373 = vst.msk [vmem:[%s2 + $0x30] sm:$0xff] %vm366, %v238
  %374 = vst.msk [vmem:[%s2 + $0x38] sm:$0xff] %vm366, %v243
  %375 = vst.msk [vmem:[%s2 + $0x40] sm:$0xff] %vm366, %v248
  %376 = vst.msk [vmem:[%s2 + $0x48] sm:$0xff] %vm366, %v253
  %377 = vst.msk [vmem:[%s2 + $0x50] sm:$0xff] %vm366, %v258
  %378 = vst.msk [vmem:[%s2 + $0x58] sm:$0xff] %vm366, %v263
  %379 = vst.msk [vmem:[%s2 + $0x60] sm:$0xff] %vm366, %v268
  %380 = vst.msk [vmem:[%s2 + $0x68] sm:$0xff] %vm366, %v273
  %381 = vst.msk [vmem:[%s2 + $0x70] sm:$0xff] %vm366, %v278
  %382 = vst.msk [vmem:[%s2 + $0x78] sm:$0xff] %vm366, %v283
  %383 = vst.msk [vmem:[%s2 + $0x80] sm:$0xff] %vm366, %v288
  %384 = vst.msk [vmem:[%s2 + $0x88] sm:$0xff] %vm366, %v293
  %385 = vst.msk [vmem:[%s2 + $0x90] sm:$0xff] %vm366, %v298
  %386 = vst.msk [vmem:[%s2 + $0x98] sm:$0xff] %vm366, %v303
  %387 = vst.msk [vmem:[%s2 + $0xa0] sm:$0xff] %vm366, %v308
  %388 = vst.msk [vmem:[%s2 + $0xa8] sm:$0xff] %vm366, %v313
  %389 = vst.msk [vmem:[%s2 + $0xb0] sm:$0xff] %vm366, %v318
  %390 = vst.msk [vmem:[%s2 + $0xb8] sm:$0xff] %vm366, %v323
  %391 = vst.msk [vmem:[%s2 + $0xc0] sm:$0xff] %vm366, %v328
  %392 = vst.msk [vmem:[%s2 + $0xc8] sm:$0xff] %vm366, %v333
  %393 = vst.msk [vmem:[%s2 + $0xd0] sm:$0xff] %vm366, %v338
  %394 = vst.msk [vmem:[%s2 + $0xd8] sm:$0xff] %vm366, %v343
  %395 = vst.msk [vmem:[%s2 + $0xe0] sm:$0xff] %vm366, %v348
  %396 = vst.msk [vmem:[%s2 + $0xe8] sm:$0xff] %vm366, %v353
  %397 = vst.msk [vmem:[%s2 + $0xf0] sm:$0xff] %vm366, %v358
  %398 = vst.msk [vmem:[%s2 + $0xf8] sm:$0xff] %vm366, %v363
  // Predicated region
  $region10: #{tpu_custom_call.1} parent=0 // pred_check
    _
  $region11: #{tpu_custom_call.1} parent=0 // pred_check_branch
    %400 = sbr.rel (0) target = $region13
  $region12: #{tpu_custom_call.1} parent=0 // pred_region
    _
  $region13: #{tpu_custom_call.1} parent=0 // pred_fallthru
    _
  // Predicated region
  $region14: #{tpu_custom_call.1} parent=0 // pred_check
    _
  $region15: #{tpu_custom_call.1} parent=0 // pred_check_branch
    %402 = sbr.rel (0) target = $region17
  $region16: #{tpu_custom_call.1} parent=0 // pred_region
    _
  $region17: #{tpu_custom_call.1} parent=0 // pred_fallthru
    _

</llo_original>
